<compile_context>
chip_gen: v6e
topology: v6e:2x2x1
jax: 0.10.0
libtpu: 0.0.40
codegen_flags: <defaults>
</compile_context>

<pallas_src>
import jax
import jax.numpy as jnp
from jax.experimental import pallas as pl
from jax.experimental.pallas import tpu as pltpu

EPS = 1e-5


# ------------------------------ Pallas kernel ------------------------------

def make_resblock_kernel(nb, H):
    """Fused ResBlock kernel; one grid step processes nb stacked batch elems."""
    R = nb * H  # rows per grid step = matmul M dimension

    def kernel(x_ref, w1_ref, b1_ref, w2_ref, ws_ref, b2_ref, o_ref):
        # x_ref : (R, W*Ci)        bf16  input slab (nb elements stacked rows)
        # w1_ref: (3, W*Ci, W*Co)  bf16  banded conv1 weights (BN1 folded)
        # b1_ref: (1, W*Co)        f32   BN1-folded bias, tiled over W
        # w2_ref: (3, W*Co, W*Co)  bf16  banded conv2 weights (BN2 folded)
        # ws_ref: (W*Ci, W*Co)     bf16  block-diag 1x1 shortcut (BNs folded)
        # b2_ref: (1, W*Co)        f32   combined conv2+shortcut bias, tiled
        # o_ref : (R, W*Co)        f32   output slab

        rows = jax.lax.broadcasted_iota(jnp.int32, (R, 1), 0)
        top = (rows % H) == 0           # first row of each batch element
        bot = (rows % H) == (H - 1)     # last row of each batch element

        # Rotate-direction probe: makes the tap construction correct whether
        # roll(x, s)[i] == x[i - s] (np.roll convention) or x[i + s].
        want_prev = jnp.where(rows == 0, R - 1, rows - 1)
        is_np_roll = pltpu.roll(rows, 1, 0) == want_prev     # (R,1), all T / all F

        def row_taps(z32):
            """(z[h-1], z[h], z[h+1]) with zeros at element boundaries, as bf16."""
            r_a = pltpu.roll(z32, 1, 0)
            r_b = pltpu.roll(z32, R - 1, 0)
            prev = jnp.where(is_np_roll, r_a, r_b)     # row h-1 (wrapped)
            nxt = jnp.where(is_np_roll, r_b, r_a)      # row h+1 (wrapped)
            prev = jnp.where(top, 0.0, prev)           # pad=1 zero at h == 0
            nxt = jnp.where(bot, 0.0, nxt)             # pad=1 zero at h == H-1
            return (prev.astype(jnp.bfloat16),
                    z32.astype(jnp.bfloat16),
                    nxt.astype(jnp.bfloat16))

        def conv3(taps, w_ref, acc):
            # 3x3 conv as 3 row-tap MXU matmuls; the KW width taps and width
            # zero-padding are already folded into the banded weight matrices.
            for dh in range(3):
                acc = acc + jnp.dot(taps[dh], w_ref[dh],
                                    preferred_element_type=jnp.float32)
            return acc

        x_bf = x_ref[...]                         # (R, W*Ci) bf16
        x32 = x_bf.astype(jnp.float32)            # f32 copy for sublane rolls

        # 1x1 shortcut first, straight into the residual accumulator (together
        # with the combined conv2+shortcut bias) so x dies right after conv1.
        acc2 = b2_ref[...] + jnp.dot(x_bf, ws_ref[...],
                                     preferred_element_type=jnp.float32)

        # Left branch stage 1: conv3x3 + folded BN1 + ELU(alpha=1).
        h = conv3(row_taps(x32), w1_ref, b1_ref[...])
        h = jnp.where(h > 0, h, jnp.exp(jnp.minimum(h, 0.0)) - 1.0)

        # Left branch stage 2: conv3x3 + folded BN2, residual add, ReLU.
        y = conv3(row_taps(h), w2_ref, acc2)
        o_ref[...] = jnp.maximum(y, 0.0).astype(o_ref.dtype)

    return kernel


# ------------------------------- JAX wrapper --------------------------------

def _fold_bn(w, b, gamma, beta, mean, var):
    """Fold eval-mode BatchNorm into conv weights/bias (w last dim = Cout)."""
    scale = gamma / jnp.sqrt(var + EPS)
    return ((w * scale).astype(jnp.float32),
            ((b - mean) * scale + beta).astype(jnp.float32))


def _band_conv_weights(w_hwio, width):
    """(KH,KW,Ci,Co) HWIO conv -> (KH, width*Ci, width*Co) banded matrices.

    Row index = in_col*Ci + ci, col index = out_col*Co + co.  The KW width taps
    and the pad=1 width zero-padding are absorbed into the band structure, so
    the kernel only loops over the KH row taps.
    """
    KH, KW, Ci, Co = w_hwio.shape
    pad = 1
    mats = []
    for dh in range(KH):
        m = jnp.zeros((width * Ci, width * Co), jnp.float32)
        for dw in range(KW):
            # sel[in_col, out_col] = 1  iff  in_col == out_col + dw - pad
            sel = jnp.eye(width, k=pad - dw, dtype=jnp.float32)
            m = m + jnp.kron(sel, w_hwio[dh, dw].astype(jnp.float32))
        mats.append(m)
    return jnp.stack(mats)


def _pick_nb(N, H, target_rows=256, min_grid_steps=2):
    """Largest per-step batch Nb (divisor of N, Nb*H <= target_rows) that still
    leaves >= min_grid_steps grid steps (v7x: 2 TCs share the grid); if that is
    impossible, fall back to the largest fitting divisor."""
    divs = [d for d in range(1, N + 1) if N % d == 0 and d * H <= target_rows]
    good = [d for d in divs if N // d >= min_grid_steps]
    if good:
        return max(good)
    return max(divs) if divs else 1


def resblock_forward(x, p):
    """x: (N, H, W, Cin) float32; p: parameter dict. Returns (N, H, W, Cout)."""
    N, H, W, Cin = x.shape
    Cout = p["w1"].shape[-1]
    WCi, WCo = W * Cin, W * Cout

    # Fold eval-mode BN into the convs (wrapper-side glue).
    w1f, b1f = _fold_bn(p["w1"], p["b1"], p["g1"], p["be1"], p["m1"], p["v1"])
    w2f, b2f = _fold_bn(p["w2"], p["b2"], p["g2"], p["be2"], p["m2"], p["v2"])
    wsf, bsf = _fold_bn(p["ws"], jnp.zeros((Cout,), jnp.float32),
                        p["gs"], p["bes"], p["ms"], p["vs"])

    # Banded / block-diagonal weight prep (absorbs width taps + width padding);
    # bf16 operands for the MXU, f32 biases for the accumulators.
    w1b = _band_conv_weights(w1f, W).astype(jnp.bfloat16)   # (3, W*Ci, W*Co)
    w2b = _band_conv_weights(w2f, W).astype(jnp.bfloat16)   # (3, W*Co, W*Co)
    wsb = jnp.kron(jnp.eye(W, dtype=jnp.float32), wsf).astype(jnp.bfloat16)
    b1s = jnp.tile(b1f, W).reshape(1, WCo)                  # f32
    b2s = jnp.tile(b2f + bsf, W).reshape(1, WCo)            # conv2 + shortcut

    nb = _pick_nb(N, H)
    grid = N // nb
    R = nb * H

    x_slab = x.reshape(N * H, WCi).astype(jnp.bfloat16)     # lane-dense slabs

    # VMEM budget from actual operand sizes (weights single-buffered; x/out
    # blocks double-buffered by the pipeline), with slack; <= 56 MiB for v7x.
    weight_bytes = 2 * (w1b.size + w2b.size + wsb.size) + 4 * (b1s.size + b2s.size)
    io_bytes = 2 * (R * WCi * 2 + R * WCo * 4)
    vmem_limit = int(min(max(4 * (weight_bytes + io_bytes) + (8 << 20),
                             16 << 20), 56 << 20))

    out_slab = pl.pallas_call(
        make_resblock_kernel(nb, H),
        out_shape=jax.ShapeDtypeStruct((N * H, WCo), jnp.float32),
        grid=(grid,),
        in_specs=[
            pl.BlockSpec((R, WCi), lambda b: (b, 0)),
            # Grid-invariant weights/biases: whole-array VMEM residents
            # (single copy, not double-buffered per grid step).
            pl.BlockSpec(memory_space=pltpu.MemorySpace.VMEM),   # w1b
            pl.BlockSpec(memory_space=pltpu.MemorySpace.VMEM),   # b1s
            pl.BlockSpec(memory_space=pltpu.MemorySpace.VMEM),   # w2b
            pl.BlockSpec(memory_space=pltpu.MemorySpace.VMEM),   # wsb
            pl.BlockSpec(memory_space=pltpu.MemorySpace.VMEM),   # b2s
        ],
        out_specs=pl.BlockSpec((R, WCo), lambda b: (b, 0)),
        compiler_params=pltpu.CompilerParams(
            dimension_semantics=("parallel",),
            vmem_limit_bytes=vmem_limit),
    )(x_slab, w1b, b1s, w2b, wsb, b2s)

    return out_slab.reshape(N, H, W, Cout)


# ---------------------------- pure-JAX reference ----------------------------

def resblock_reference(x, p):
    dn = ("NHWC", "HWIO", "NHWC")

    def conv(z, w, pad):
        return jax.lax.conv_general_dilated(z, w, (1, 1), pad,
                                            dimension_numbers=dn)

    def bn(z, gamma, beta, mean, var):
        return (z - mean) / jnp.sqrt(var + EPS) * gamma + beta

    h = conv(x, p["w1"], ((1, 1), (1, 1))) + p["b1"]
    h = bn(h, p["g1"], p["be1"], p["m1"], p["v1"])
    h = jnp.where(h > 0, h, jnp.exp(h) - 1.0)                 # ELU
    h = conv(h, p["w2"], ((1, 1), (1, 1))) + p["b2"]
    h = bn(h, p["g2"], p["be2"], p["m2"], p["v2"])
    sc = conv(x, p["ws"], ((0, 0), (0, 0)))                   # 1x1, bias=False
    sc = bn(sc, p["gs"], p["bes"], p["ms"], p["vs"])
    return jnp.maximum(h + sc, 0.0)


# ------------------------------------ main -----------------------------------

def init_params(key, cin, cout, k):
    keys = jax.random.split(key, 12)
    u = lambda kk, shape, lo, hi: jax.random.uniform(
        kk, shape, jnp.float32, lo, hi)
    return {
        # conv1 (cin->cout, k x k, bias=True) + BN1
        "w1": u(keys[0], (k, k, cin, cout), -0.2, 0.2),
        "b1": u(keys[1], (cout,), -0.1, 0.1),
        "g1": u(keys[2], (cout,), 0.8, 1.2),
        "be1": u(keys[3], (cout,), -0.1, 0.1),
        "m1": u(keys[4], (cout,), -0.2, 0.2),
        "v1": u(keys[5], (cout,), 0.5, 1.5),
        # conv2 (cout->cout, k x k, bias=True) + BN2
        "w2": u(keys[6], (k, k, cout, cout), -0.2, 0.2),
        "b2": u(keys[7], (cout,), -0.1, 0.1),
        "g2": u(keys[8], (cout,), 0.8, 1.2),
        "be2": u(keys[9], (cout,), -0.1, 0.1),
        "m2": u(keys[10], (cout,), -0.2, 0.2),
        "v2": u(keys[11], (cout,), 0.5, 1.5),
        # shortcut 1x1 conv (cin->cout, bias=False) + BNs
        "ws": u(jax.random.fold_in(key, 100), (cin, cout), -0.3, 0.3),
        "gs": u(jax.random.fold_in(key, 101), (cout,), 0.8, 1.2),
        "bes": u(jax.random.fold_in(key, 102), (cout,), -0.1, 0.1),
        "ms": u(jax.random.fold_in(key, 103), (cout,), -0.2, 0.2),
        "vs": u(jax.random.fold_in(key, 104), (cout,), 0.5, 1.5),
    }


if __name__ == "__main__":
    # NHWC view of the NCHW spec shape [2, 4, 16, 16]; stride=1, Cin != Cout.
    N, Cin, Cout, H, W, K = 2, 4, 8, 16, 16, 3

    key = jax.random.PRNGKey(0)
    kx, kp = jax.random.split(key)
    x = jax.random.normal(kx, (N, H, W, Cin), jnp.float32)
    params = init_params(kp, Cin, Cout, K)

    # 1x1 shortcut weight needs HWIO shape for the reference conv.
    params_ref = dict(params)
    params_ref["ws"] = params["ws"].reshape(1, 1, Cin, Cout)

    out = jax.block_until_ready(jax.jit(resblock_forward)(x, params))
    ref = jax.block_until_ready(resblock_reference(x, params_ref))

    assert out.shape == (N, H, W, Cout)
    max_err = float(jnp.max(jnp.abs(out - ref)))
    # bf16 MXU operands with f32 accumulation -> relaxed tolerance vs f32 ref.
    assert jnp.allclose(out, ref, rtol=2e-2, atol=5e-2), max_err
    print("KERNEL_OK")
</pallas_src>

<mosaic_0001>
module attributes {stable_mosaic.version = 11 : i64} {
  func.func @kernel(%arg0: i32, %arg1: memref<16x64xbf16, #tpu.memory_space<vmem>>, %arg2: memref<3x64x128xbf16, #tpu.memory_space<vmem>>, %arg3: memref<1x128xf32, #tpu.memory_space<vmem>>, %arg4: memref<3x128x128xbf16, #tpu.memory_space<vmem>>, %arg5: memref<64x128xbf16, #tpu.memory_space<vmem>>, %arg6: memref<1x128xf32, #tpu.memory_space<vmem>>, %arg7: memref<16x128xf32, #tpu.memory_space<vmem>>) attributes {dimension_semantics = [#tpu.dimension_semantics<parallel>], iteration_bounds = array<i64: 2>, scalar_prefetch = 0 : i64, scratch_operands = 0 : i64, tpu.core_type = #tpu.core_type<tc>, window_params = [{transform_indices = @transform_0, window_bounds = array<i64: 16, 64>}, {pipeline_mode = #tpu.pipeline_mode<synchronous>, transform_indices = @transform_1, window_bounds = array<i64: 3, 64, 128>}, {pipeline_mode = #tpu.pipeline_mode<synchronous>, transform_indices = @transform_2, window_bounds = array<i64: 1, 128>}, {pipeline_mode = #tpu.pipeline_mode<synchronous>, transform_indices = @transform_3, window_bounds = array<i64: 3, 128, 128>}, {pipeline_mode = #tpu.pipeline_mode<synchronous>, transform_indices = @transform_4, window_bounds = array<i64: 64, 128>}, {pipeline_mode = #tpu.pipeline_mode<synchronous>, transform_indices = @transform_5, window_bounds = array<i64: 1, 128>}, {transform_indices = @transform_6, window_bounds = array<i64: 16, 128>}]} {
    %0 = tpu.iota {dimensions = array<i32: 0>} : vector<16x1xi32>
    %c16_i32 = arith.constant 16 : i32
    %c0_i32 = arith.constant 0 : i32
    %1 = arith.cmpi eq, %c16_i32, %c0_i32 : i32
    %c1_i32 = arith.constant 1 : i32
    %2 = arith.select %1, %c1_i32, %c16_i32 : i32
    %3 = vector.broadcast %2 : i32 to vector<16x1xi32>
    %4 = arith.remsi %0, %3 : vector<16x1xi32>
    %c0_i32_0 = arith.constant 0 : i32
    %5 = vector.broadcast %c0_i32_0 : i32 to vector<16x1xi32>
    %6 = arith.cmpi ne, %4, %5 : vector<16x1xi32>
    %c0_i32_1 = arith.constant 0 : i32
    %7 = vector.broadcast %c0_i32_1 : i32 to vector<16x1xi32>
    %8 = arith.cmpi slt, %4, %7 : vector<16x1xi32>
    %c0_i32_2 = arith.constant 0 : i32
    %9 = arith.cmpi slt, %2, %c0_i32_2 : i32
    %10 = vector.broadcast %9 : i1 to vector<16x1xi1>
    %11 = vector.broadcast %10 : vector<16x1xi1> to vector<16x1xi1>
    %12 = arith.xori %8, %11 : vector<16x1xi1>
    %13 = arith.andi %12, %6 : vector<16x1xi1>
    %14 = vector.broadcast %2 : i32 to vector<16x1xi32>
    %15 = arith.addi %4, %14 : vector<16x1xi32>
    %16 = arith.select %13, %15, %4 : vector<16x1xi1>, vector<16x1xi32>
    %c0_i32_3 = arith.constant 0 : i32
    %17 = vector.broadcast %c0_i32_3 : i32 to vector<16x1xi32>
    %18 = arith.cmpi eq, %16, %17 : vector<16x1xi32>
    %c16_i32_4 = arith.constant 16 : i32
    %c0_i32_5 = arith.constant 0 : i32
    %19 = arith.cmpi eq, %c16_i32_4, %c0_i32_5 : i32
    %c1_i32_6 = arith.constant 1 : i32
    %20 = arith.select %19, %c1_i32_6, %c16_i32_4 : i32
    %21 = vector.broadcast %20 : i32 to vector<16x1xi32>
    %22 = arith.remsi %0, %21 : vector<16x1xi32>
    %c0_i32_7 = arith.constant 0 : i32
    %23 = vector.broadcast %c0_i32_7 : i32 to vector<16x1xi32>
    %24 = arith.cmpi ne, %22, %23 : vector<16x1xi32>
    %c0_i32_8 = arith.constant 0 : i32
    %25 = vector.broadcast %c0_i32_8 : i32 to vector<16x1xi32>
    %26 = arith.cmpi slt, %22, %25 : vector<16x1xi32>
    %c0_i32_9 = arith.constant 0 : i32
    %27 = arith.cmpi slt, %20, %c0_i32_9 : i32
    %28 = vector.broadcast %27 : i1 to vector<16x1xi1>
    %29 = vector.broadcast %28 : vector<16x1xi1> to vector<16x1xi1>
    %30 = arith.xori %26, %29 : vector<16x1xi1>
    %31 = arith.andi %30, %24 : vector<16x1xi1>
    %32 = vector.broadcast %20 : i32 to vector<16x1xi32>
    %33 = arith.addi %22, %32 : vector<16x1xi32>
    %34 = arith.select %31, %33, %22 : vector<16x1xi1>, vector<16x1xi32>
    %c15_i32 = arith.constant 15 : i32
    %35 = vector.broadcast %c15_i32 : i32 to vector<16x1xi32>
    %36 = arith.cmpi eq, %34, %35 : vector<16x1xi32>
    %c0_i32_10 = arith.constant 0 : i32
    %37 = vector.broadcast %c0_i32_10 : i32 to vector<16x1xi32>
    %38 = arith.cmpi eq, %0, %37 : vector<16x1xi32>
    %c1_i32_11 = arith.constant 1 : i32
    %39 = vector.broadcast %c1_i32_11 : i32 to vector<16x1xi32>
    %40 = arith.subi %0, %39 : vector<16x1xi32>
    %c15_i32_12 = arith.constant 15 : i32
    %41 = vector.broadcast %c15_i32_12 : i32 to vector<16x1xi32>
    %42 = arith.select %38, %41, %40 : vector<16x1xi1>, vector<16x1xi32>
    %c1_i32_13 = arith.constant 1 : i32
    %43 = tpu.dynamic_rotate %0 by %c1_i32_13 dim 0 : vector<16x1xi32>, i32 -> vector<16x1xi32>
    %44 = arith.cmpi eq, %43, %42 : vector<16x1xi32>
    %c0 = arith.constant 0 : index
    %c0_14 = arith.constant 0 : index
    %45 = vector.load %arg1[%c0, %c0_14] : memref<16x64xbf16, #tpu.memory_space<vmem>>, vector<16x64xbf16>
    %46 = arith.extf %45 : vector<16x64xbf16> to vector<16x64xf32>
    %c0_15 = arith.constant 0 : index
    %c0_16 = arith.constant 0 : index
    %47 = vector.load %arg6[%c0_15, %c0_16] : memref<1x128xf32, #tpu.memory_space<vmem>>, vector<1x128xf32>
    %c0_17 = arith.constant 0 : index
    %c0_18 = arith.constant 0 : index
    %48 = vector.load %arg5[%c0_17, %c0_18] : memref<64x128xbf16, #tpu.memory_space<vmem>>, vector<64x128xbf16>
    %cst = arith.constant dense<0.000000e+00> : vector<16x128xf32>
    %49 = tpu.matmul %45, %48, %cst {dimension_numbers = #tpu.dot_dimension_numbers<[1], [0], [0], [1], [0, 0, 1, 1], [], []>} : vector<16x64xbf16>, vector<64x128xbf16>, vector<16x128xf32> -> vector<16x128xf32>
    %50 = vector.broadcast %47 : vector<1x128xf32> to vector<16x128xf32>
    %51 = arith.addf %50, %49 : vector<16x128xf32>
    %c1_i32_19 = arith.constant 1 : i32
    %52 = tpu.dynamic_rotate %46 by %c1_i32_19 dim 0 : vector<16x64xf32>, i32 -> vector<16x64xf32>
    %c15_i32_20 = arith.constant 15 : i32
    %53 = tpu.dynamic_rotate %46 by %c15_i32_20 dim 0 : vector<16x64xf32>, i32 -> vector<16x64xf32>
    %54 = vector.shape_cast %44 : vector<16x1xi1> to vector<16x1xi1>
    %55 = vector.broadcast %54 : vector<16x1xi1> to vector<16x64xi1>
    %56 = arith.select %55, %52, %53 : vector<16x64xi1>, vector<16x64xf32>
    %57 = vector.shape_cast %44 : vector<16x1xi1> to vector<16x1xi1>
    %58 = vector.broadcast %57 : vector<16x1xi1> to vector<16x64xi1>
    %59 = arith.select %58, %53, %52 : vector<16x64xi1>, vector<16x64xf32>
    %cst_21 = arith.constant 0.000000e+00 : f32
    %60 = vector.shape_cast %18 : vector<16x1xi1> to vector<16x1xi1>
    %61 = vector.broadcast %60 : vector<16x1xi1> to vector<16x64xi1>
    %62 = vector.broadcast %cst_21 : f32 to vector<16x64xf32>
    %63 = arith.select %61, %62, %56 : vector<16x64xi1>, vector<16x64xf32>
    %cst_22 = arith.constant 0.000000e+00 : f32
    %64 = vector.shape_cast %36 : vector<16x1xi1> to vector<16x1xi1>
    %65 = vector.broadcast %64 : vector<16x1xi1> to vector<16x64xi1>
    %66 = vector.broadcast %cst_22 : f32 to vector<16x64xf32>
    %67 = arith.select %65, %66, %59 : vector<16x64xi1>, vector<16x64xf32>
    %68 = arith.truncf %63 : vector<16x64xf32> to vector<16x64xbf16>
    %69 = arith.truncf %46 : vector<16x64xf32> to vector<16x64xbf16>
    %70 = arith.truncf %67 : vector<16x64xf32> to vector<16x64xbf16>
    %c0_23 = arith.constant 0 : index
    %c0_24 = arith.constant 0 : index
    %71 = vector.load %arg3[%c0_23, %c0_24] : memref<1x128xf32, #tpu.memory_space<vmem>>, vector<1x128xf32>
    %c0_25 = arith.constant 0 : index
    %c0_26 = arith.constant 0 : index
    %c0_27 = arith.constant 0 : index
    %72 = vector.load %arg2[%c0_25, %c0_26, %c0_27] : memref<3x64x128xbf16, #tpu.memory_space<vmem>>, vector<1x64x128xbf16>
    %73 = vector.shape_cast %72 : vector<1x64x128xbf16> to vector<64x128xbf16>
    %cst_28 = arith.constant dense<0.000000e+00> : vector<16x128xf32>
    %74 = tpu.matmul %68, %73, %cst_28 {dimension_numbers = #tpu.dot_dimension_numbers<[1], [0], [0], [1], [0, 0, 1, 1], [], []>} : vector<16x64xbf16>, vector<64x128xbf16>, vector<16x128xf32> -> vector<16x128xf32>
    %75 = vector.broadcast %71 : vector<1x128xf32> to vector<16x128xf32>
    %76 = arith.addf %75, %74 : vector<16x128xf32>
    %c1 = arith.constant 1 : index
    %c0_29 = arith.constant 0 : index
    %c0_30 = arith.constant 0 : index
    %77 = vector.load %arg2[%c1, %c0_29, %c0_30] : memref<3x64x128xbf16, #tpu.memory_space<vmem>>, vector<1x64x128xbf16>
    %78 = vector.shape_cast %77 : vector<1x64x128xbf16> to vector<64x128xbf16>
    %cst_31 = arith.constant dense<0.000000e+00> : vector<16x128xf32>
    %79 = tpu.matmul %69, %78, %cst_31 {dimension_numbers = #tpu.dot_dimension_numbers<[1], [0], [0], [1], [0, 0, 1, 1], [], []>} : vector<16x64xbf16>, vector<64x128xbf16>, vector<16x128xf32> -> vector<16x128xf32>
    %80 = arith.addf %76, %79 : vector<16x128xf32>
    %c2 = arith.constant 2 : index
    %c0_32 = arith.constant 0 : index
    %c0_33 = arith.constant 0 : index
    %81 = vector.load %arg2[%c2, %c0_32, %c0_33] : memref<3x64x128xbf16, #tpu.memory_space<vmem>>, vector<1x64x128xbf16>
    %82 = vector.shape_cast %81 : vector<1x64x128xbf16> to vector<64x128xbf16>
    %cst_34 = arith.constant dense<0.000000e+00> : vector<16x128xf32>
    %83 = tpu.matmul %70, %82, %cst_34 {dimension_numbers = #tpu.dot_dimension_numbers<[1], [0], [0], [1], [0, 0, 1, 1], [], []>} : vector<16x64xbf16>, vector<64x128xbf16>, vector<16x128xf32> -> vector<16x128xf32>
    %84 = arith.addf %80, %83 : vector<16x128xf32>
    %cst_35 = arith.constant 0.000000e+00 : f32
    %85 = vector.broadcast %cst_35 : f32 to vector<16x128xf32>
    %86 = arith.cmpf ogt, %84, %85 : vector<16x128xf32>
    %cst_36 = arith.constant 0.000000e+00 : f32
    %87 = vector.broadcast %cst_36 : f32 to vector<16x128xf32>
    %88 = arith.minimumf %84, %87 : vector<16x128xf32>
    %89 = math.exp %88 : vector<16x128xf32>
    %cst_37 = arith.constant 1.000000e+00 : f32
    %90 = vector.broadcast %cst_37 : f32 to vector<16x128xf32>
    %91 = arith.subf %89, %90 : vector<16x128xf32>
    %92 = arith.select %86, %84, %91 : vector<16x128xi1>, vector<16x128xf32>
    %c1_i32_38 = arith.constant 1 : i32
    %93 = tpu.dynamic_rotate %92 by %c1_i32_38 dim 0 : vector<16x128xf32>, i32 -> vector<16x128xf32>
    %c15_i32_39 = arith.constant 15 : i32
    %94 = tpu.dynamic_rotate %92 by %c15_i32_39 dim 0 : vector<16x128xf32>, i32 -> vector<16x128xf32>
    %95 = vector.shape_cast %44 : vector<16x1xi1> to vector<16x1xi1>
    %96 = vector.broadcast %95 : vector<16x1xi1> to vector<16x128xi1>
    %97 = arith.select %96, %93, %94 : vector<16x128xi1>, vector<16x128xf32>
    %98 = vector.shape_cast %44 : vector<16x1xi1> to vector<16x1xi1>
    %99 = vector.broadcast %98 : vector<16x1xi1> to vector<16x128xi1>
    %100 = arith.select %99, %94, %93 : vector<16x128xi1>, vector<16x128xf32>
    %cst_40 = arith.constant 0.000000e+00 : f32
    %101 = vector.shape_cast %18 : vector<16x1xi1> to vector<16x1xi1>
    %102 = vector.broadcast %101 : vector<16x1xi1> to vector<16x128xi1>
    %103 = vector.broadcast %cst_40 : f32 to vector<16x128xf32>
    %104 = arith.select %102, %103, %97 : vector<16x128xi1>, vector<16x128xf32>
    %cst_41 = arith.constant 0.000000e+00 : f32
    %105 = vector.shape_cast %36 : vector<16x1xi1> to vector<16x1xi1>
    %106 = vector.broadcast %105 : vector<16x1xi1> to vector<16x128xi1>
    %107 = vector.broadcast %cst_41 : f32 to vector<16x128xf32>
    %108 = arith.select %106, %107, %100 : vector<16x128xi1>, vector<16x128xf32>
    %109 = arith.truncf %104 : vector<16x128xf32> to vector<16x128xbf16>
    %110 = arith.truncf %92 : vector<16x128xf32> to vector<16x128xbf16>
    %111 = arith.truncf %108 : vector<16x128xf32> to vector<16x128xbf16>
    %c0_42 = arith.constant 0 : index
    %c0_43 = arith.constant 0 : index
    %c0_44 = arith.constant 0 : index
    %112 = vector.load %arg4[%c0_42, %c0_43, %c0_44] : memref<3x128x128xbf16, #tpu.memory_space<vmem>>, vector<1x128x128xbf16>
    %113 = vector.shape_cast %112 : vector<1x128x128xbf16> to vector<128x128xbf16>
    %cst_45 = arith.constant dense<0.000000e+00> : vector<16x128xf32>
    %114 = tpu.matmul %109, %113, %cst_45 {dimension_numbers = #tpu.dot_dimension_numbers<[1], [0], [0], [1], [0, 0, 1, 1], [], []>} : vector<16x128xbf16>, vector<128x128xbf16>, vector<16x128xf32> -> vector<16x128xf32>
    %115 = arith.addf %51, %114 : vector<16x128xf32>
    %c1_46 = arith.constant 1 : index
    %c0_47 = arith.constant 0 : index
    %c0_48 = arith.constant 0 : index
    %116 = vector.load %arg4[%c1_46, %c0_47, %c0_48] : memref<3x128x128xbf16, #tpu.memory_space<vmem>>, vector<1x128x128xbf16>
    %117 = vector.shape_cast %116 : vector<1x128x128xbf16> to vector<128x128xbf16>
    %cst_49 = arith.constant dense<0.000000e+00> : vector<16x128xf32>
    %118 = tpu.matmul %110, %117, %cst_49 {dimension_numbers = #tpu.dot_dimension_numbers<[1], [0], [0], [1], [0, 0, 1, 1], [], []>} : vector<16x128xbf16>, vector<128x128xbf16>, vector<16x128xf32> -> vector<16x128xf32>
    %119 = arith.addf %115, %118 : vector<16x128xf32>
    %c2_50 = arith.constant 2 : index
    %c0_51 = arith.constant 0 : index
    %c0_52 = arith.constant 0 : index
    %120 = vector.load %arg4[%c2_50, %c0_51, %c0_52] : memref<3x128x128xbf16, #tpu.memory_space<vmem>>, vector<1x128x128xbf16>
    %121 = vector.shape_cast %120 : vector<1x128x128xbf16> to vector<128x128xbf16>
    %cst_53 = arith.constant dense<0.000000e+00> : vector<16x128xf32>
    %122 = tpu.matmul %111, %121, %cst_53 {dimension_numbers = #tpu.dot_dimension_numbers<[1], [0], [0], [1], [0, 0, 1, 1], [], []>} : vector<16x128xbf16>, vector<128x128xbf16>, vector<16x128xf32> -> vector<16x128xf32>
    %123 = arith.addf %119, %122 : vector<16x128xf32>
    %cst_54 = arith.constant 0.000000e+00 : f32
    %124 = vector.broadcast %cst_54 : f32 to vector<16x128xf32>
    %125 = arith.maximumf %123, %124 : vector<16x128xf32>
    %c0_55 = arith.constant 0 : index
    %c0_56 = arith.constant 0 : index
    %126 = vector.load %arg7[%c0_55, %c0_56] : memref<16x128xf32, #tpu.memory_space<vmem>>, vector<16x128xf32>
    tpu.vector_store %arg7[%c0_55, %c0_56], %125 {strides = array<i32>} : memref<16x128xf32, #tpu.memory_space<vmem>>, vector<16x128xf32>,
    return
  }
  func.func @transform_0(%arg0: i32) -> (i32, i32) {
    %c0_i32 = arith.constant 0 : i32
    %c0_i32_0 = arith.constant 0 : i32
    return %arg0, %c0_i32 : i32, i32
  }
  func.func @transform_1(%arg0: i32) -> (i32, i32, i32) {
    %c0_i32 = arith.constant 0 : i32
    %c0_i32_0 = arith.constant 0 : i32
    %c0_i32_1 = arith.constant 0 : i32
    %c0_i32_2 = arith.constant 0 : i32
    return %c0_i32, %c0_i32_0, %c0_i32_1 : i32, i32, i32
  }
  func.func @transform_2(%arg0: i32) -> (i32, i32) {
    %c0_i32 = arith.constant 0 : i32
    %c0_i32_0 = arith.constant 0 : i32
    %c0_i32_1 = arith.constant 0 : i32
    return %c0_i32, %c0_i32_0 : i32, i32
  }
  func.func @transform_3(%arg0: i32) -> (i32, i32, i32) {
    %c0_i32 = arith.constant 0 : i32
    %c0_i32_0 = arith.constant 0 : i32
    %c0_i32_1 = arith.constant 0 : i32
    %c0_i32_2 = arith.constant 0 : i32
    return %c0_i32, %c0_i32_0, %c0_i32_1 : i32, i32, i32
  }
  func.func @transform_4(%arg0: i32) -> (i32, i32) {
    %c0_i32 = arith.constant 0 : i32
    %c0_i32_0 = arith.constant 0 : i32
    %c0_i32_1 = arith.constant 0 : i32
    return %c0_i32, %c0_i32_0 : i32, i32
  }
  func.func @transform_5(%arg0: i32) -> (i32, i32) {
    %c0_i32 = arith.constant 0 : i32
    %c0_i32_0 = arith.constant 0 : i32
    %c0_i32_1 = arith.constant 0 : i32
    return %c0_i32, %c0_i32_0 : i32, i32
  }
  func.func @transform_6(%arg0: i32) -> (i32, i32) {
    %c0_i32 = arith.constant 0 : i32
    %c0_i32_0 = arith.constant 0 : i32
    return %arg0, %c0_i32 : i32, i32
  }
}

</mosaic_0001>

<llo_original>
// kernel: tile.18
$region0: #{tile.18}
  #allocation0 [shape = 's32[1]{0}', space=sflag, size = 0x4, scoped, tag = 'scoped memory for tile.18']
  %s0 = inlined_call_operand.vmem [shape: f32[8], index: 0, kind: input, shape index: {}]
  %s1 = inlined_call_operand.vmem [shape: f32[16,8], index: 1, kind: output, shape index: {}]
  // Predicated region
  $region2: #{tile.18} parent=0 // pred_check
    _
  $region3: #{tile.18} parent=0 // pred_check_branch
    %3 = sbr.rel (0) target = $region5
  $region4: #{tile.18} parent=0 // pred_region
    _
  $region5: #{tile.18} parent=0 // pred_fallthru
    _
  %v4 = vld [vmem:[%s0] ss:$0 sm:$0xff]
  %5 = vst [vmem:[%s1] sm:$0xff] %v4
  %s6 = scalar_lea.vmem %s1, 8
  %7 = vst [vmem:[%s6] sm:$0xff] %v4

// kernel: tile.19
$region0: #{tile.19}
  %s0 = inlined_call_operand.vmem [shape: f32[16,8], index: 0, kind: input, shape index: {}]
  %s1 = inlined_call_operand.vmem [shape: f32[1,128], index: 1, kind: output, shape index: {}]
  $region1: #{tile.19} parent=0
    #allocation0 [shape = 'u8[4096]{0}', space=vmem, size = 0x1000, scoped, tag = 'scoped mem for output reshape']
    %v2 = vld [vmem:[%s0] sm:$0x1]
    %vm3 = vcmask 64512
    %4 = vst.msk [vmem:[#allocation0] sm:$0x1] %vm3, %v2
    %s5 = scalar_lea.vmem %s0, 15
    %v6 = vld [vmem:[%s5] sm:$0x1]
    %7 = vrot.lane.b32.xlu0 %v6, 120
    %v8 = vpop.permute.xlu0 %7
    %vm9 = vcmask 1048512
    %10 = vst.msk [vmem:[#allocation0] sm:$0x1] %vm9, %v8
    %s11 = scalar_lea.vmem %s0, 14
    %v12 = vld [vmem:[%s11] sm:$0x1]
    %13 = vrot.lane.b32.xlu0 %v12, 112
    %v14 = vpop.permute.xlu0 %13
    %vm15 = vcmask 982912
    %16 = vst.msk [vmem:[#allocation0] sm:$0x1] %vm15, %v14
    %s17 = scalar_lea.vmem %s0, 13
    %v18 = vld [vmem:[%s17] sm:$0x1]
    %19 = vrot.lane.b32.xlu0 %v18, 104
    %v20 = vpop.permute.xlu0 %19
    %vm21 = vcmask 917312
    %22 = vst.msk [vmem:[#allocation0] sm:$0x1] %vm21, %v20
    %s23 = scalar_lea.vmem %s0, 12
    %v24 = vld [vmem:[%s23] sm:$0x1]
    %25 = vrot.lane.b32.xlu0 %v24, 96
    %v26 = vpop.permute.xlu0 %25
    %vm27 = vcmask 851712
    %28 = vst.msk [vmem:[#allocation0] sm:$0x1] %vm27, %v26
    %s29 = scalar_lea.vmem %s0, 11
    %v30 = vld [vmem:[%s29] sm:$0x1]
    %31 = vrot.lane.b32.xlu0 %v30, 88
    %v32 = vpop.permute.xlu0 %31
    %vm33 = vcmask 786112
    %34 = vst.msk [vmem:[#allocation0] sm:$0x1] %vm33, %v32
    %s35 = scalar_lea.vmem %s0, 10
    %v36 = vld [vmem:[%s35] sm:$0x1]
    %37 = vrot.lane.b32.xlu0 %v36, 80
    %v38 = vpop.permute.xlu0 %37
    %vm39 = vcmask 720512
    %40 = vst.msk [vmem:[#allocation0] sm:$0x1] %vm39, %v38
    %s41 = scalar_lea.vmem %s0, 9
    %v42 = vld [vmem:[%s41] sm:$0x1]
    %43 = vrot.lane.b32.xlu0 %v42, 72
    %v44 = vpop.permute.xlu0 %43
    %vm45 = vcmask 654912
    %46 = vst.msk [vmem:[#allocation0] sm:$0x1] %vm45, %v44
    %s47 = scalar_lea.vmem %s0, 8
    %v48 = vld [vmem:[%s47] sm:$0x1]
    %49 = vrot.lane.b32.xlu0 %v48, 64
    %v50 = vpop.permute.xlu0 %49
    %vm51 = vcmask 589312
    %52 = vst.msk [vmem:[#allocation0] sm:$0x1] %vm51, %v50
    %s53 = scalar_lea.vmem %s0, 7
    %v54 = vld [vmem:[%s53] sm:$0x1]
    %55 = vrot.lane.b32.xlu0 %v54, 56
    %v56 = vpop.permute.xlu0 %55
    %vm57 = vcmask 523712
    %58 = vst.msk [vmem:[#allocation0] sm:$0x1] %vm57, %v56
    %s59 = scalar_lea.vmem %s0, 6
    %v60 = vld [vmem:[%s59] sm:$0x1]
    %61 = vrot.lane.b32.xlu0 %v60, 48
    %v62 = vpop.permute.xlu0 %61
    %vm63 = vcmask 458112
    %64 = vst.msk [vmem:[#allocation0] sm:$0x1] %vm63, %v62
    %s65 = scalar_lea.vmem %s0, 5
    %v66 = vld [vmem:[%s65] sm:$0x1]
    %67 = vrot.lane.b32.xlu0 %v66, 40
    %v68 = vpop.permute.xlu0 %67
    %vm69 = vcmask 392512
    %70 = vst.msk [vmem:[#allocation0] sm:$0x1] %vm69, %v68
    %s71 = scalar_lea.vmem %s0, 4
    %v72 = vld [vmem:[%s71] sm:$0x1]
    %73 = vrot.lane.b32.xlu0 %v72, 32
    %v74 = vpop.permute.xlu0 %73
    %vm75 = vcmask 326912
    %76 = vst.msk [vmem:[#allocation0] sm:$0x1] %vm75, %v74
    %s77 = scalar_lea.vmem %s0, 3
    %v78 = vld [vmem:[%s77] sm:$0x1]
    %79 = vrot.lane.b32.xlu0 %v78, 24
    %v80 = vpop.permute.xlu0 %79
    %vm81 = vcmask 261312
    %82 = vst.msk [vmem:[#allocation0] sm:$0x1] %vm81, %v80
    %s83 = scalar_lea.vmem %s0, 2
    %v84 = vld [vmem:[%s83] sm:$0x1]
    %85 = vrot.lane.b32.xlu0 %v84, 16
    %v86 = vpop.permute.xlu0 %85
    %vm87 = vcmask 195712
    %88 = vst.msk [vmem:[#allocation0] sm:$0x1] %vm87, %v86
    %s89 = scalar_lea.vmem %s0, 1
    %v90 = vld [vmem:[%s89] sm:$0x1]
    %91 = vrot.lane.b32.xlu0 %v90, 8
    %v92 = vpop.permute.xlu0 %91
    %vm93 = vcmask 130112
    %94 = vst.msk [vmem:[#allocation0] sm:$0x1] %vm93, %v92
    %s96 = sshll.u32 1, 1
    %s97 = ssub.s32 %s96, 1
    %v99 = vld [vmem:[#allocation0] sm:%s97]
    %s100 = sshll.u32 1, 1
    %s101 = ssub.s32 %s100, 1
    %102 = vst [vmem:[%s1] sm:%s101] %v99

// kernel: resblock_forward.1
$region0: #{resblock_forward.1}
  #allocation0 [shape = 'u32[]', space=smem, size = 0x4, offset = 0x4, fixed_abs, tag = 'smem constant byte address 0x4 - core index']
  #allocation1 [shape = 'u32[144,128]{1,0:T(1,128)}', space=vmem, size = 0x12000, scoped, tag = 'internal scratch']
  %s0 = inlined_call_operand.vmem [shape: bf16[32,64], index: 0, kind: input, shape index: {}]
  %s1 = inlined_call_operand.vmem [shape: bf16[3,64,128], index: 1, kind: input, shape index: {}]
  %s2 = inlined_call_operand.vmem [shape: f32[1,128], index: 2, kind: input, shape index: {}]
  %s3 = inlined_call_operand.vmem [shape: bf16[3,128,128], index: 3, kind: input, shape index: {}]
  %s4 = inlined_call_operand.vmem [shape: bf16[64,128], index: 4, kind: input, shape index: {}]
  %s5 = inlined_call_operand.vmem [shape: f32[1,128], index: 5, kind: input, shape index: {}]
  %s6 = inlined_call_operand.vmem [shape: f32[32,128], index: 6, kind: output, shape index: {}]
  %s7 = sld [smem:[#allocation0]]
  $region57: #{resblock_forward.1} parent=0
    _
  %s9 = ssub.s32 1, %s7
  %s10 = scalar_select 0, %s9, %s7
  loop: start=0, step=1, limit=4
  $region2: #{resblock_forward.1} parent=0 // loop_pre_header
    _
  $region3: #{resblock_forward.1} parent=0 // loop_header
    %s12 = sphi 0, %s16
    %p13 = scmp.ge.s32.totalorder %s12, 4
    %s22 = sphi 0, %s24
    %s25 = sphi 0, %s22
    %s26 = sphi 0, %s25
    %s42 = sphi 0, %s26
    %s46 = sphi 0, %s46
    %s48 = sphi 0, %s46
    %s49 = sphi 0, %s48
    %s63 = sphi 0, %s49
    %s67 = sphi 0, %s67
    %s69 = sphi 0, %s67
    %s70 = sphi 0, %s69
    %s84 = sphi 0, %s70
    %s88 = sphi 0, %s88
    %s90 = sphi 0, %s88
    %s91 = sphi 0, %s90
    %s105 = sphi 0, %s91
    %s109 = sphi 0, %s109
    %s111 = sphi 0, %s109
    %s112 = sphi 0, %s111
    %s126 = sphi 0, %s112
    %s130 = sphi 0, %s130
    %s132 = sphi 0, %s130
    %s133 = sphi 0, %s132
    %s147 = sphi 0, %s133
    %s153 = sphi 0, %s155
    %s156 = sphi 0, %s153
    %s157 = sphi 0, %s156
    %s173 = sphi 0, %s157
  $region4: #{resblock_forward.1} parent=0 // loop_header_branch
    %15 = sbr.rel (%p13) target = $region8
  $region5: #{resblock_forward.1} parent=0 // loop_body
    %s17 = ssub.s32 %s12, 1
    %s18 = ssub.s32 %s12, 2
    %s19 = sadd.s32 %s12, 1
    %s20 = ssub.s32 %s12, %s19
    %p21 = scmp.eq.s32.totalorder %s20, 0
    %s23 = sadd.s32 %s22, 1
    %s24 = scalar_select %p21, %s22, %s23
    %p27 = pneg %p21
    %p28 = scmp.eq.s32.totalorder %s12, 1
    %p29 = por %p27, %p28
    %p30 = scmp.ne.s32.totalorder %s22, %s25
    %p31 = scmp.eq.s32.totalorder %s12, 0
    %p32 = por %p30, %p31
    %p33 = scmp.ne.s32.totalorder %s22, %s25
    %p34 = scmp.eq.s32.totalorder %s17, 1
    %p35 = por %p33, %p34
    %p36 = scmp.ne.s32.totalorder %s25, %s26
    %p37 = scmp.eq.s32.totalorder %s17, 0
    %p38 = por %p36, %p37
    %p39 = scmp.ne.s32.totalorder %s25, %s26
    %p40 = scmp.eq.s32.totalorder %s18, 1
    %p41 = por %p39, %p40
    %p43 = scmp.ne.s32.totalorder %s26, %s42
    %p44 = scmp.eq.s32.totalorder %s18, 0
    %p45 = por %p43, %p44
    %s47 = sadd.s32 %s46, 1
    %p50 = scmp.eq.s32.totalorder %s12, 1
    %p51 = scmp.ne.s32.totalorder %s46, %s48
    %p52 = scmp.eq.s32.totalorder %s12, 0
    %p53 = por %p51, %p52
    %p54 = scmp.ne.s32.totalorder %s46, %s48
    %p55 = scmp.eq.s32.totalorder %s17, 1
    %p56 = por %p54, %p55
    %p57 = scmp.ne.s32.totalorder %s48, %s49
    %p58 = scmp.eq.s32.totalorder %s17, 0
    %p59 = por %p57, %p58
    %p60 = scmp.ne.s32.totalorder %s48, %s49
    %p61 = scmp.eq.s32.totalorder %s18, 1
    %p62 = por %p60, %p61
    %p64 = scmp.ne.s32.totalorder %s49, %s63
    %p65 = scmp.eq.s32.totalorder %s18, 0
    %p66 = por %p64, %p65
    %s68 = sadd.s32 %s67, 1
    %p71 = scmp.eq.s32.totalorder %s12, 1
    %p72 = scmp.ne.s32.totalorder %s67, %s69
    %p73 = scmp.eq.s32.totalorder %s12, 0
    %p74 = por %p72, %p73
    %p75 = scmp.ne.s32.totalorder %s67, %s69
    %p76 = scmp.eq.s32.totalorder %s17, 1
    %p77 = por %p75, %p76
    %p78 = scmp.ne.s32.totalorder %s69, %s70
    %p79 = scmp.eq.s32.totalorder %s17, 0
    %p80 = por %p78, %p79
    %p81 = scmp.ne.s32.totalorder %s69, %s70
    %p82 = scmp.eq.s32.totalorder %s18, 1
    %p83 = por %p81, %p82
    %p85 = scmp.ne.s32.totalorder %s70, %s84
    %p86 = scmp.eq.s32.totalorder %s18, 0
    %p87 = por %p85, %p86
    %s89 = sadd.s32 %s88, 1
    %p92 = scmp.eq.s32.totalorder %s12, 1
    %p93 = scmp.ne.s32.totalorder %s88, %s90
    %p94 = scmp.eq.s32.totalorder %s12, 0
    %p95 = por %p93, %p94
    %p96 = scmp.ne.s32.totalorder %s88, %s90
    %p97 = scmp.eq.s32.totalorder %s17, 1
    %p98 = por %p96, %p97
    %p99 = scmp.ne.s32.totalorder %s90, %s91
    %p100 = scmp.eq.s32.totalorder %s17, 0
    %p101 = por %p99, %p100
    %p102 = scmp.ne.s32.totalorder %s90, %s91
    %p103 = scmp.eq.s32.totalorder %s18, 1
    %p104 = por %p102, %p103
    %p106 = scmp.ne.s32.totalorder %s91, %s105
    %p107 = scmp.eq.s32.totalorder %s18, 0
    %p108 = por %p106, %p107
    %s110 = sadd.s32 %s109, 1
    %p113 = scmp.eq.s32.totalorder %s12, 1
    %p114 = scmp.ne.s32.totalorder %s109, %s111
    %p115 = scmp.eq.s32.totalorder %s12, 0
    %p116 = por %p114, %p115
    %p117 = scmp.ne.s32.totalorder %s109, %s111
    %p118 = scmp.eq.s32.totalorder %s17, 1
    %p119 = por %p117, %p118
    %p120 = scmp.ne.s32.totalorder %s111, %s112
    %p121 = scmp.eq.s32.totalorder %s17, 0
    %p122 = por %p120, %p121
    %p123 = scmp.ne.s32.totalorder %s111, %s112
    %p124 = scmp.eq.s32.totalorder %s18, 1
    %p125 = por %p123, %p124
    %p127 = scmp.ne.s32.totalorder %s112, %s126
    %p128 = scmp.eq.s32.totalorder %s18, 0
    %p129 = por %p127, %p128
    %s131 = sadd.s32 %s130, 1
    %p134 = scmp.eq.s32.totalorder %s12, 1
    %p135 = scmp.ne.s32.totalorder %s130, %s132
    %p136 = scmp.eq.s32.totalorder %s12, 0
    %p137 = por %p135, %p136
    %p138 = scmp.ne.s32.totalorder %s130, %s132
    %p139 = scmp.eq.s32.totalorder %s17, 1
    %p140 = por %p138, %p139
    %p141 = scmp.ne.s32.totalorder %s132, %s133
    %p142 = scmp.eq.s32.totalorder %s17, 0
    %p143 = por %p141, %p142
    %p144 = scmp.ne.s32.totalorder %s132, %s133
    %p145 = scmp.eq.s32.totalorder %s18, 1
    %p146 = por %p144, %p145
    %p148 = scmp.ne.s32.totalorder %s133, %s147
    %p149 = scmp.eq.s32.totalorder %s18, 0
    %p150 = por %p148, %p149
    %s151 = ssub.s32 %s12, %s19
    %p152 = scmp.eq.s32.totalorder %s151, 0
    %s154 = sadd.s32 %s153, 1
    %s155 = scalar_select %p152, %s153, %s154
    %p158 = pneg %p152
    %p159 = scmp.eq.s32.totalorder %s12, 1
    %p160 = por %p158, %p159
    %p161 = scmp.ne.s32.totalorder %s153, %s156
    %p162 = scmp.eq.s32.totalorder %s12, 0
    %p163 = por %p161, %p162
    %p164 = scmp.ne.s32.totalorder %s153, %s156
    %p165 = scmp.eq.s32.totalorder %s17, 1
    %p166 = por %p164, %p165
    %p167 = scmp.ne.s32.totalorder %s156, %s157
    %p168 = scmp.eq.s32.totalorder %s17, 0
    %p169 = por %p167, %p168
    %p170 = scmp.ne.s32.totalorder %s156, %s157
    %p171 = scmp.eq.s32.totalorder %s18, 1
    %p172 = por %p170, %p171
    %p174 = scmp.ne.s32.totalorder %s157, %s173
    %p175 = scmp.eq.s32.totalorder %s18, 0
    %p176 = por %p174, %p175
    %p177 = scmp.le.s32.totalorder 1, %s12
    %p178 = scmp.lt.s32.totalorder %s12, 3
    %p179 = pnand %p177, %p178
    %p180 = pneg %p179
    // Predicated region
    $region9: #{resblock_forward.1} parent=5 // pred_check
      _
    $region10: #{resblock_forward.1} parent=5 // pred_check_branch
      %182 = sbr.rel (%p179) target = $region12
    $region11: #{resblock_forward.1} parent=5 // pred_region
      %s183 = ssub.s32 %s12, 1
      // Predicated region
      $region13: #{resblock_forward.1} parent=11 // pred_check
        %p184 = pneg %p59
      $region14: #{resblock_forward.1} parent=11 // pred_check_branch
        %186 = sbr.rel (%p184) target = $region16
      $region15: #{resblock_forward.1} parent=11 // pred_region
        _
      $region16: #{resblock_forward.1} parent=11 // pred_fallthru
        _
      // Predicated region
      $region17: #{resblock_forward.1} parent=11 // pred_check
        %p187 = pneg %p80
      $region18: #{resblock_forward.1} parent=11 // pred_check_branch
        %189 = sbr.rel (%p187) target = $region20
      $region19: #{resblock_forward.1} parent=11 // pred_region
        _
      $region20: #{resblock_forward.1} parent=11 // pred_fallthru
        _
      // Predicated region
      $region21: #{resblock_forward.1} parent=11 // pred_check
        %p190 = pneg %p101
      $region22: #{resblock_forward.1} parent=11 // pred_check_branch
        %192 = sbr.rel (%p190) target = $region24
      $region23: #{resblock_forward.1} parent=11 // pred_region
        _
      $region24: #{resblock_forward.1} parent=11 // pred_fallthru
        _
      // Predicated region
      $region25: #{resblock_forward.1} parent=11 // pred_check
        %p193 = pneg %p122
      $region26: #{resblock_forward.1} parent=11 // pred_check_branch
        %195 = sbr.rel (%p193) target = $region28
      $region27: #{resblock_forward.1} parent=11 // pred_region
        _
      $region28: #{resblock_forward.1} parent=11 // pred_fallthru
        _
      // Predicated region
      $region29: #{resblock_forward.1} parent=11 // pred_check
        %p196 = pneg %p143
      $region30: #{resblock_forward.1} parent=11 // pred_check_branch
        %198 = sbr.rel (%p196) target = $region32
      $region31: #{resblock_forward.1} parent=11 // pred_region
        _
      $region32: #{resblock_forward.1} parent=11 // pred_fallthru
        _
    $region12: #{resblock_forward.1} parent=5 // pred_fallthru
      _
    %p199 = scmp.lt.s32.totalorder %s12, 2
    // Predicated region
    $region33: #{resblock_forward.1} parent=5 // pred_check
      %p200 = pneg %p199
    $region34: #{resblock_forward.1} parent=5 // pred_check_branch
      %202 = sbr.rel (%p200) target = $region36
    $region35: #{resblock_forward.1} parent=5 // pred_region
      // Predicated region
      $region37: #{resblock_forward.1} parent=35 // pred_check
        %p203 = pneg %p32
      $region38: #{resblock_forward.1} parent=35 // pred_check_branch
        %205 = sbr.rel (%p203) target = $region40
      $region39: #{resblock_forward.1} parent=35 // pred_region
        %s206 = smul.u32 2, %s12
        %p207 = scmp.lt.s32.totalorder %s206, 3
        %s208 = scalar_select %p207, %s206, 3
        %s209 = smul.addr %s208, 4
        %s210 = scalar_lea.vmem %s0, %s209
        %s211 = smul.u32 2, %s12
      $region40: #{resblock_forward.1} parent=35 // pred_fallthru
        _
    $region36: #{resblock_forward.1} parent=5 // pred_fallthru
      _
    %p212 = scmp.le.s32.totalorder 1, %s12
    %p213 = scmp.lt.s32.totalorder %s12, 3
    %p214 = pnand %p212, %p213
    %p215 = pneg %p214
    // Predicated region
    $region41: #{resblock_forward.1} parent=5 // pred_check
      _
    $region42: #{resblock_forward.1} parent=5 // pred_check_branch
      %217 = sbr.rel (%p214) target = $region44
    $region43: #{resblock_forward.1} parent=5 // pred_region
      %s218 = ssub.s32 %s12, 1
      %s219 = smul.u32 2, %s17
      %p220 = scmp.lt.s32.totalorder %s219, 3
      %s221 = scalar_select %p220, %s219, 3
      %s222 = smul.addr %s221, 4
      %s223 = scalar_lea.vmem %s0, %s222
      %p224 = pneg %p38
      %p225 = pneg %p35
      %p226 = pneg %p59
      %p227 = pneg %p56
      %p228 = pneg %p80
      %p229 = pneg %p77
      %p230 = pneg %p101
      %p231 = pneg %p98
      %p232 = pneg %p122
      %p233 = pneg %p119
      %p234 = pneg %p143
      %p235 = pneg %p140
      %p236 = pneg %p169
      %p237 = pneg %p166
      %s238 = smul.u32 2, %s17
      %p239 = scmp.lt.s32.totalorder %s238, 3
      %s240 = scalar_select %p239, %s238, 3
      %s241 = smul.addr %s240, 8
      %s242 = scalar_lea.vmem %s6, %s241
      %s243 = smul.u32 2, %s17
      %p244 = scmp.lt.s32.totalorder %s243, 3
      %s245 = scalar_select %p244, %s243, 3
      %s246 = smul.addr %s245, 4
      %s247 = scalar_lea.vmem %s0, %s246
      %s248 = smul.u32 2, %s17
      %s249 = smul.u32 2, %s17
      %p250 = scmp.lt.s32.totalorder %s249, 3
      %s251 = scalar_select %p250, %s249, 3
      %s252 = smul.addr %s251, 8
      %s253 = scalar_lea.vmem %s6, %s252
      %s254 = smul.u32 2, %s17
      %v256 = vlaneseq
      %v257 = vshrl.u32 %v256, 7
      %v258 = vadd.s32 %v257, 8
      %vm259 = vcmp.lt.s32.totalorder %v257, 0
      %v260 = vsub.s32 0, %v257
      %v261 = vsel %vm259, %v260, %v257
      %v262 = vshrl.u32 %v261, 4
      %v263 = vand.u32 %v261, 15
      %v264 = vsub.s32 0, %v263
      %v265 = vsel %vm259, %v264, %v263
      %vm266 = vcmp.lt.s32.totalorder %v258, 0
      %v267 = vsub.s32 0, %v258
      %v268 = vsel %vm266, %v267, %v258
      %v269 = vshrl.u32 %v268, 4
      %v270 = vand.u32 %v268, 15
      %v271 = vsub.s32 0, %v270
      %v272 = vsel %vm266, %v271, %v270
      %vm273 = vcmp.ne.s32.totalorder %v265, 0
      %vm274 = vcmp.ne.s32.totalorder %v272, 0
      %vm275 = vcmp.lt.s32.totalorder %v265, 0
      %vm276 = vcmp.lt.s32.totalorder %v272, 0
      %vm277 = vmand %vm275, %vm273
      %vm278 = vmand %vm276, %vm274
      %v279 = vadd.s32 %v265, 16
      %v280 = vadd.s32 %v272, 16
      %v281 = vsel %vm277, %v279, %v265
      %v282 = vsel %vm278, %v280, %v272
      %vm283 = vcmp.eq.s32.totalorder %v281, 0
      %vm284 = vcmp.eq.s32.totalorder %v282, 0
      %vm285 = vcmp.eq.s32.totalorder %v281, 15
      %vm286 = vcmp.eq.s32.totalorder %v282, 15
      %vm287 = vcmp.eq.s32.totalorder %v257, 0
      %vm288 = vcmp.eq.s32.totalorder %v258, 0
      %v289 = vsub.s32 %v257, 1
      %v290 = vsub.s32 %v258, 1
      %v291 = vsel %vm287, 15, %v289
      %v292 = vsel %vm288, 15, %v290
      %v293 = vrot.slane %v257, 7
      %v294 = vrot.slane %v258, 7
      %vm295 = vcmp.lt.s32.totalorder %v257, 1
      %v296 = vsel %vm295, %v293, %v294
      %v297 = vsel %vm295, %v294, %v293
      %vm298 = vcmp.eq.s32.totalorder %v297, %v291
      %vm299 = vcmp.eq.s32.totalorder %v296, %v292
      %v300 = vld [vmem:[%s247] sm:$0xf]
      %v301 = vld [vmem:[%s247 + $0x4] sm:$0xf]
      %v302 = vunpack.c.l.bf16 %v300
      %v303 = vunpack.c.l.bf16 %v301
      %v304 = vld [vmem:[%s5] sm:$0x1]
      %v305 = vld [vmem:[%s4] sm:$0xf]
      %v306 = vld [vmem:[%s4 + $0x4] sm:$0xf]
      %v307 = vld [vmem:[%s4 + $0x8] sm:$0xf]
      %v308 = vld [vmem:[%s4 + $0xc] sm:$0xf]
      %v309 = vld [vmem:[%s4 + $0x10] sm:$0xf]
      %v310 = vld [vmem:[%s4 + $0x14] sm:$0xf]
      %v311 = vld [vmem:[%s4 + $0x18] sm:$0xf]
      %v312 = vld [vmem:[%s4 + $0x1c] sm:$0xf]
      %v315 = vunpack.c.l.b16 %v300
      %v316 = vunpack.c.l.b16 %v301
      %v317 = vpack.c.b16 %v316, %v315
      %v326 = vunpack.c.l.b16 %v305
      %v327 = vunpack.c.l.b16 %v306
      %v328 = vunpack.c.l.b16 %v307
      %v329 = vunpack.c.l.b16 %v308
      %v330 = vunpack.c.l.b16 %v309
      %v331 = vunpack.c.l.b16 %v310
      %v332 = vunpack.c.l.b16 %v311
      %v333 = vunpack.c.l.b16 %v312
      %v334 = vpack.c.b16 %v327, %v326
      %v335 = vpack.c.b16 %v329, %v328
      %v336 = vpack.c.b16 %v331, %v330
      %v337 = vpack.c.b16 %v333, %v332
      %vm342 = vcmask 523264
      %v344 = vsel %vm342, %v317, 0
      %346 = vmatprep.subr.bf16.mxu0 0
      %347 = vmatpush1.bf16.msra.mxu0 0
      %348 = vmatprep.subr.bf16.mxu0 0
      %349 = vmatpush1.bf16.msra.mxu0 0
      %350 = vmatprep.subr.bf16.mxu0 0
      %351 = vmatpush1.bf16.msra.mxu0 0
      %352 = vmatprep.subr.bf16.mxu0 0
      %353 = vmatpush1.bf16.msra.mxu0 0
      %354 = vmatprep.subr.bf16.mxu0 0
      %355 = vmatpush1.bf16.msra.mxu0 %v337
      %356 = vmatprep.subr.bf16.mxu0 0
      %357 = vmatpush1.bf16.msra.mxu0 %v336
      %358 = vmatprep.subr.bf16.mxu0 0
      %359 = vmatpush1.bf16.msra.mxu0 %v335
      %360 = vmatprep.subr.bf16.mxu0 0
      %361 = vmatpush1.bf16.msra.mxu0 %v334
      %362 = vmatprep.subr.bf16.mxu0 0
      %363 = vmatpush2.bf16.msra.mxu0 0
      %364 = vmatprep.subr.bf16.mxu0 0
      %365 = vmatpush2.bf16.msra.mxu0 0
      %366 = vmatprep.subr.bf16.mxu0 0
      %367 = vmatpush2.bf16.msra.mxu0 0
      %368 = vmatprep.subr.bf16.mxu0 0
      %369 = vmatpush2.bf16.msra.mxu0 0
      %370 = vmatprep.subr.bf16.mxu0 0
      %371 = vmatpush2.bf16.msra.mxu0 0
      %372 = vmatprep.subr.bf16.mxu0 0
      %373 = vmatpush2.bf16.msra.mxu0 0
      %374 = vmatprep.subr.bf16.mxu0 0
      %375 = vmatpush2.bf16.msra.mxu0 0
      %376 = vmatprep.subr.bf16.mxu0 0
      %377 = vmatpush2.bf16.msra.mxu0 0
      %378 = vmatprep.mubr.bf16.mxu0 0
      %379 = vmatmul.mubr.bf16.gmra.mxu0 %v344
      %v380 = vpop.f32.mrf.mxu0
      %v381 = vadd.f32 0.0, %v380
      %v382 = vpop.f32.mrf.mxu0
      %v383 = vpop.f32.mrf.mxu0
      %v384 = vadd.f32 0.0, %v383
      %v385 = vpop.f32.mrf.mxu0
      %386 = vdwg.mxu0
      %v388 = vlaneseq
      %v389 = vshrl.u32 %v388, 7
      %v390 = vsub.s32 0, %v389
      %v391 = vrot.slane %v304, %v390
      %v393 = vadd.f32 %v391, %v381
      %v394 = vadd.f32 %v391, %v384
      %v395 = vrot.slane %v302, 7
      %v396 = vrot.slane %v303, 7
      %v397 = vsel %vm295, %v395, %v396
      %v398 = vsel %vm295, %v396, %v395
      %v399 = vrot.slane %v302, 1
      %v400 = vrot.slane %v303, 1
      %vm401 = vcmp.lt.s32.totalorder %v257, 7
      %v402 = vsel %vm401, %v399, %v400
      %v403 = vsel %vm401, %v400, %v399
      %v404 = vsel %vm298, 1, 0
      %v405 = vsel %vm299, 1, 0
      %406 = vset.pattern.permute.xlu0 0
      %407 = vperm.xlu0 %406, %v404
      %v408 = vpop.permute.xlu0 %407
      %409 = vset.pattern.permute.xlu0 0
      %410 = vperm.xlu0 %409, %v405
      %v411 = vpop.permute.xlu0 %410
      %vm412 = vcmp.eq.s32.totalorder %v408, 1
      %vm413 = vcmp.eq.s32.totalorder %v411, 1
      %v414 = vsel %vm412, %v398, %v402
      %v415 = vsel %vm413, %v397, %v403
      %v416 = vsel %vm412, %v402, %v398
      %v417 = vsel %vm413, %v403, %v397
      %v418 = vsel %vm283, 1, 0
      %v419 = vsel %vm284, 1, 0
      %vm420 = vcmp.eq.s32.totalorder %v418, 1
      %vm421 = vcmp.eq.s32.totalorder %v419, 1
      %v422 = vsel %vm420, 0.0, %v414
      %v423 = vsel %vm421, 0.0, %v415
      %v424 = vsel %vm285, 1, 0
      %v425 = vsel %vm286, 1, 0
      %vm426 = vcmp.eq.s32.totalorder %v424, 1
      %vm427 = vcmp.eq.s32.totalorder %v425, 1
      %v428 = vsel %vm426, 0.0, %v416
      %v429 = vsel %vm427, 0.0, %v417
      %v430 = vpack.c.bf16 %v423, %v422
      %v431 = vpack.c.bf16 %v429, %v428
      %v432 = vld [vmem:[%s2] sm:$0x1]
      %v433 = vld [vmem:[%s1] sm:$0xf]
      %v434 = vld [vmem:[%s1 + $0x4] sm:$0xf]
      %v435 = vld [vmem:[%s1 + $0x8] sm:$0xf]
      %v436 = vld [vmem:[%s1 + $0xc] sm:$0xf]
      %v437 = vld [vmem:[%s1 + $0x10] sm:$0xf]
      %v438 = vld [vmem:[%s1 + $0x14] sm:$0xf]
      %v439 = vld [vmem:[%s1 + $0x18] sm:$0xf]
      %v440 = vld [vmem:[%s1 + $0x1c] sm:$0xf]
      %v449 = vunpack.c.l.b16 %v433
      %v450 = vunpack.c.l.b16 %v434
      %v451 = vunpack.c.l.b16 %v435
      %v452 = vunpack.c.l.b16 %v436
      %v453 = vunpack.c.l.b16 %v437
      %v454 = vunpack.c.l.b16 %v438
      %v455 = vunpack.c.l.b16 %v439
      %v456 = vunpack.c.l.b16 %v440
      %v457 = vpack.c.b16 %v450, %v449
      %v458 = vpack.c.b16 %v452, %v451
      %v459 = vpack.c.b16 %v454, %v453
      %v460 = vpack.c.b16 %v456, %v455
      %v466 = vsel %vm342, %v430, 0
      %468 = vmatprep.subr.bf16.mxu0 0
      %469 = vmatpush1.bf16.msra.mxu0 0
      %470 = vmatprep.subr.bf16.mxu0 0
      %471 = vmatpush1.bf16.msra.mxu0 0
      %472 = vmatprep.subr.bf16.mxu0 0
      %473 = vmatpush1.bf16.msra.mxu0 0
      %474 = vmatprep.subr.bf16.mxu0 0
      %475 = vmatpush1.bf16.msra.mxu0 0
      %476 = vmatprep.subr.bf16.mxu0 0
      %477 = vmatpush1.bf16.msra.mxu0 %v460
      %478 = vmatprep.subr.bf16.mxu0 0
      %479 = vmatpush1.bf16.msra.mxu0 %v459
      %480 = vmatprep.subr.bf16.mxu0 0
      %481 = vmatpush1.bf16.msra.mxu0 %v458
      %482 = vmatprep.subr.bf16.mxu0 0
      %483 = vmatpush1.bf16.msra.mxu0 %v457
      %484 = vmatprep.subr.bf16.mxu0 0
      %485 = vmatpush2.bf16.msra.mxu0 0
      %486 = vmatprep.subr.bf16.mxu0 0
      %487 = vmatpush2.bf16.msra.mxu0 0
      %488 = vmatprep.subr.bf16.mxu0 0
      %489 = vmatpush2.bf16.msra.mxu0 0
      %490 = vmatprep.subr.bf16.mxu0 0
      %491 = vmatpush2.bf16.msra.mxu0 0
      %492 = vmatprep.subr.bf16.mxu0 0
      %493 = vmatpush2.bf16.msra.mxu0 0
      %494 = vmatprep.subr.bf16.mxu0 0
      %495 = vmatpush2.bf16.msra.mxu0 0
      %496 = vmatprep.subr.bf16.mxu0 0
      %497 = vmatpush2.bf16.msra.mxu0 0
      %498 = vmatprep.subr.bf16.mxu0 0
      %499 = vmatpush2.bf16.msra.mxu0 0
      %500 = vmatprep.mubr.bf16.mxu0 0
      %501 = vmatmul.mubr.bf16.gmra.mxu0 %v466
      %v502 = vpop.f32.mrf.mxu0
      %v503 = vadd.f32 0.0, %v502
      %v504 = vpop.f32.mrf.mxu0
      %v505 = vpop.f32.mrf.mxu0
      %v506 = vadd.f32 0.0, %v505
      %v507 = vpop.f32.mrf.mxu0
      %508 = vdwg.mxu0
      %v510 = vlaneseq
      %v511 = vshrl.u32 %v510, 7
      %v512 = vsub.s32 0, %v511
      %v513 = vrot.slane %v432, %v512
      %v515 = vadd.f32 %v513, %v503
      %v516 = vadd.f32 %v513, %v506
      %s517 = scalar_lea.vmem %s1, 32
      %v518 = vld [vmem:[%s517] sm:$0xf]
      %v519 = vld [vmem:[%s517 + $0x4] sm:$0xf]
      %v520 = vld [vmem:[%s517 + $0x8] sm:$0xf]
      %v521 = vld [vmem:[%s517 + $0xc] sm:$0xf]
      %v522 = vld [vmem:[%s517 + $0x10] sm:$0xf]
      %v523 = vld [vmem:[%s517 + $0x14] sm:$0xf]
      %v524 = vld [vmem:[%s517 + $0x18] sm:$0xf]
      %v525 = vld [vmem:[%s517 + $0x1c] sm:$0xf]
      %v534 = vunpack.c.l.b16 %v518
      %v535 = vunpack.c.l.b16 %v519
      %v536 = vunpack.c.l.b16 %v520
      %v537 = vunpack.c.l.b16 %v521
      %v538 = vunpack.c.l.b16 %v522
      %v539 = vunpack.c.l.b16 %v523
      %v540 = vunpack.c.l.b16 %v524
      %v541 = vunpack.c.l.b16 %v525
      %v542 = vpack.c.b16 %v535, %v534
      %v543 = vpack.c.b16 %v537, %v536
      %v544 = vpack.c.b16 %v539, %v538
      %v545 = vpack.c.b16 %v541, %v540
      %550 = vmatprep.subr.bf16.mxu0 0
      %551 = vmatpush1.bf16.msra.mxu0 0
      %552 = vmatprep.subr.bf16.mxu0 0
      %553 = vmatpush1.bf16.msra.mxu0 0
      %554 = vmatprep.subr.bf16.mxu0 0
      %555 = vmatpush1.bf16.msra.mxu0 0
      %556 = vmatprep.subr.bf16.mxu0 0
      %557 = vmatpush1.bf16.msra.mxu0 0
      %558 = vmatprep.subr.bf16.mxu0 0
      %559 = vmatpush1.bf16.msra.mxu0 %v545
      %560 = vmatprep.subr.bf16.mxu0 0
      %561 = vmatpush1.bf16.msra.mxu0 %v544
      %562 = vmatprep.subr.bf16.mxu0 0
      %563 = vmatpush1.bf16.msra.mxu0 %v543
      %564 = vmatprep.subr.bf16.mxu0 0
      %565 = vmatpush1.bf16.msra.mxu0 %v542
      %566 = vmatprep.subr.bf16.mxu0 0
      %567 = vmatpush2.bf16.msra.mxu0 0
      %568 = vmatprep.subr.bf16.mxu0 0
      %569 = vmatpush2.bf16.msra.mxu0 0
      %570 = vmatprep.subr.bf16.mxu0 0
      %571 = vmatpush2.bf16.msra.mxu0 0
      %572 = vmatprep.subr.bf16.mxu0 0
      %573 = vmatpush2.bf16.msra.mxu0 0
      %574 = vmatprep.subr.bf16.mxu0 0
      %575 = vmatpush2.bf16.msra.mxu0 0
      %576 = vmatprep.subr.bf16.mxu0 0
      %577 = vmatpush2.bf16.msra.mxu0 0
      %578 = vmatprep.subr.bf16.mxu0 0
      %579 = vmatpush2.bf16.msra.mxu0 0
      %580 = vmatprep.subr.bf16.mxu0 0
      %581 = vmatpush2.bf16.msra.mxu0 0
      %582 = vmatprep.mubr.bf16.mxu0 0
      %583 = vmatmul.mubr.bf16.gmra.mxu0 %v344
      %v584 = vpop.f32.mrf.mxu0
      %v585 = vadd.f32 0.0, %v584
      %v586 = vpop.f32.mrf.mxu0
      %v587 = vpop.f32.mrf.mxu0
      %v588 = vadd.f32 0.0, %v587
      %v589 = vpop.f32.mrf.mxu0
      %590 = vdwg.mxu0
      %v591 = vadd.f32 %v515, %v585
      %v592 = vadd.f32 %v516, %v588
      %s593 = scalar_lea.vmem %s1, 64
      %v594 = vld [vmem:[%s593] sm:$0xf]
      %v595 = vld [vmem:[%s593 + $0x4] sm:$0xf]
      %v596 = vld [vmem:[%s593 + $0x8] sm:$0xf]
      %v597 = vld [vmem:[%s593 + $0xc] sm:$0xf]
      %v598 = vld [vmem:[%s593 + $0x10] sm:$0xf]
      %v599 = vld [vmem:[%s593 + $0x14] sm:$0xf]
      %v600 = vld [vmem:[%s593 + $0x18] sm:$0xf]
      %v601 = vld [vmem:[%s593 + $0x1c] sm:$0xf]
      %v610 = vunpack.c.l.b16 %v594
      %v611 = vunpack.c.l.b16 %v595
      %v612 = vunpack.c.l.b16 %v596
      %v613 = vunpack.c.l.b16 %v597
      %v614 = vunpack.c.l.b16 %v598
      %v615 = vunpack.c.l.b16 %v599
      %v616 = vunpack.c.l.b16 %v600
      %v617 = vunpack.c.l.b16 %v601
      %v618 = vpack.c.b16 %v611, %v610
      %v619 = vpack.c.b16 %v613, %v612
      %v620 = vpack.c.b16 %v615, %v614
      %v621 = vpack.c.b16 %v617, %v616
      %v627 = vsel %vm342, %v431, 0
      %629 = vmatprep.subr.bf16.mxu0 0
      %630 = vmatpush1.bf16.msra.mxu0 0
      %631 = vmatprep.subr.bf16.mxu0 0
      %632 = vmatpush1.bf16.msra.mxu0 0
      %633 = vmatprep.subr.bf16.mxu0 0
      %634 = vmatpush1.bf16.msra.mxu0 0
      %635 = vmatprep.subr.bf16.mxu0 0
      %636 = vmatpush1.bf16.msra.mxu0 0
      %637 = vmatprep.subr.bf16.mxu0 0
      %638 = vmatpush1.bf16.msra.mxu0 %v621
      %639 = vmatprep.subr.bf16.mxu0 0
      %640 = vmatpush1.bf16.msra.mxu0 %v620
      %641 = vmatprep.subr.bf16.mxu0 0
      %642 = vmatpush1.bf16.msra.mxu0 %v619
      %643 = vmatprep.subr.bf16.mxu0 0
      %644 = vmatpush1.bf16.msra.mxu0 %v618
      %645 = vmatprep.subr.bf16.mxu0 0
      %646 = vmatpush2.bf16.msra.mxu0 0
      %647 = vmatprep.subr.bf16.mxu0 0
      %648 = vmatpush2.bf16.msra.mxu0 0
      %649 = vmatprep.subr.bf16.mxu0 0
      %650 = vmatpush2.bf16.msra.mxu0 0
      %651 = vmatprep.subr.bf16.mxu0 0
      %652 = vmatpush2.bf16.msra.mxu0 0
      %653 = vmatprep.subr.bf16.mxu0 0
      %654 = vmatpush2.bf16.msra.mxu0 0
      %655 = vmatprep.subr.bf16.mxu0 0
      %656 = vmatpush2.bf16.msra.mxu0 0
      %657 = vmatprep.subr.bf16.mxu0 0
      %658 = vmatpush2.bf16.msra.mxu0 0
      %659 = vmatprep.subr.bf16.mxu0 0
      %660 = vmatpush2.bf16.msra.mxu0 0
      %661 = vmatprep.mubr.bf16.mxu0 0
      %662 = vmatmul.mubr.bf16.gmra.mxu0 %v627
      %v663 = vpop.f32.mrf.mxu0
      %v664 = vadd.f32 0.0, %v663
      %v665 = vpop.f32.mrf.mxu0
      %v666 = vpop.f32.mrf.mxu0
      %v667 = vadd.f32 0.0, %v666
      %v668 = vpop.f32.mrf.mxu0
      %669 = vdwg.mxu0
      %v670 = vadd.f32 %v591, %v664
      %v671 = vadd.f32 %v592, %v667
      %vm672 = vcmp.gt.f32.partialorder %v670, 0.0
      %vm673 = vcmp.gt.f32.partialorder %v671, 0.0
      %v674 = vmin.f32 %v670, 0.0
      %v675 = vmin.f32 %v671, 0.0
      %v676 = vmul.f32 %v674, 1.442695
      %v677 = vpow.pop %v676
      %v678 = vmul.f32 %v675, 1.442695
      %v679 = vpow.pop %v678
      %v680 = vsub.f32 %v677, 1.0
      %v681 = vsub.f32 %v679, 1.0
      %v682 = vsel %vm672, %v670, %v680
      %v683 = vsel %vm673, %v671, %v681
      %v684 = vrot.slane %v682, 7
      %v685 = vrot.slane %v683, 7
      %v686 = vsel %vm295, %v684, %v685
      %v687 = vsel %vm295, %v685, %v684
      %v688 = vrot.slane %v682, 1
      %v689 = vrot.slane %v683, 1
      %v690 = vsel %vm401, %v688, %v689
      %v691 = vsel %vm401, %v689, %v688
      %v692 = vsel %vm412, %v687, %v690
      %v693 = vsel %vm413, %v686, %v691
      %v694 = vsel %vm412, %v690, %v687
      %v695 = vsel %vm413, %v691, %v686
      %v696 = vsel %vm420, 0.0, %v692
      %v697 = vsel %vm421, 0.0, %v693
      %v698 = vsel %vm426, 0.0, %v694
      %v699 = vsel %vm427, 0.0, %v695
      %v700 = vpack.c.bf16 %v697, %v696
      %v701 = vpack.c.bf16 %v683, %v682
      %v702 = vpack.c.bf16 %v699, %v698
      %v703 = vld [vmem:[%s3] sm:$0xf]
      %v704 = vld [vmem:[%s3 + $0x4] sm:$0xf]
      %v705 = vld [vmem:[%s3 + $0x8] sm:$0xf]
      %v706 = vld [vmem:[%s3 + $0xc] sm:$0xf]
      %v707 = vld [vmem:[%s3 + $0x10] sm:$0xf]
      %v708 = vld [vmem:[%s3 + $0x14] sm:$0xf]
      %v709 = vld [vmem:[%s3 + $0x18] sm:$0xf]
      %v710 = vld [vmem:[%s3 + $0x1c] sm:$0xf]
      %v711 = vld [vmem:[%s3 + $0x20] sm:$0xf]
      %v712 = vld [vmem:[%s3 + $0x24] sm:$0xf]
      %v713 = vld [vmem:[%s3 + $0x28] sm:$0xf]
      %v714 = vld [vmem:[%s3 + $0x2c] sm:$0xf]
      %v715 = vld [vmem:[%s3 + $0x30] sm:$0xf]
      %v716 = vld [vmem:[%s3 + $0x34] sm:$0xf]
      %v717 = vld [vmem:[%s3 + $0x38] sm:$0xf]
      %v718 = vld [vmem:[%s3 + $0x3c] sm:$0xf]
      %v735 = vunpack.c.l.b16 %v703
      %v736 = vunpack.c.l.b16 %v704
      %v737 = vunpack.c.l.b16 %v705
      %v738 = vunpack.c.l.b16 %v706
      %v739 = vunpack.c.l.b16 %v707
      %v740 = vunpack.c.l.b16 %v708
      %v741 = vunpack.c.l.b16 %v709
      %v742 = vunpack.c.l.b16 %v710
      %v743 = vunpack.c.l.b16 %v711
      %v744 = vunpack.c.l.b16 %v712
      %v745 = vunpack.c.l.b16 %v713
      %v746 = vunpack.c.l.b16 %v714
      %v747 = vunpack.c.l.b16 %v715
      %v748 = vunpack.c.l.b16 %v716
      %v749 = vunpack.c.l.b16 %v717
      %v750 = vunpack.c.l.b16 %v718
      %v751 = vpack.c.b16 %v736, %v735
      %v752 = vpack.c.b16 %v738, %v737
      %v753 = vpack.c.b16 %v740, %v739
      %v754 = vpack.c.b16 %v742, %v741
      %v755 = vpack.c.b16 %v744, %v743
      %v756 = vpack.c.b16 %v746, %v745
      %v757 = vpack.c.b16 %v748, %v747
      %v758 = vpack.c.b16 %v750, %v749
      %767 = vmatprep.subr.bf16.mxu0 0
      %768 = vmatpush1.bf16.msra.mxu0 %v758
      %769 = vmatprep.subr.bf16.mxu0 0
      %770 = vmatpush1.bf16.msra.mxu0 %v757
      %771 = vmatprep.subr.bf16.mxu0 0
      %772 = vmatpush1.bf16.msra.mxu0 %v756
      %773 = vmatprep.subr.bf16.mxu0 0
      %774 = vmatpush1.bf16.msra.mxu0 %v755
      %775 = vmatprep.subr.bf16.mxu0 0
      %776 = vmatpush1.bf16.msra.mxu0 %v754
      %777 = vmatprep.subr.bf16.mxu0 0
      %778 = vmatpush1.bf16.msra.mxu0 %v753
      %779 = vmatprep.subr.bf16.mxu0 0
      %780 = vmatpush1.bf16.msra.mxu0 %v752
      %781 = vmatprep.subr.bf16.mxu0 0
      %782 = vmatpush1.bf16.msra.mxu0 %v751
      %783 = vmatprep.subr.bf16.mxu0 0
      %784 = vmatpush2.bf16.msra.mxu0 0
      %785 = vmatprep.subr.bf16.mxu0 0
      %786 = vmatpush2.bf16.msra.mxu0 0
      %787 = vmatprep.subr.bf16.mxu0 0
      %788 = vmatpush2.bf16.msra.mxu0 0
      %789 = vmatprep.subr.bf16.mxu0 0
      %790 = vmatpush2.bf16.msra.mxu0 0
      %791 = vmatprep.subr.bf16.mxu0 0
      %792 = vmatpush2.bf16.msra.mxu0 0
      %793 = vmatprep.subr.bf16.mxu0 0
      %794 = vmatpush2.bf16.msra.mxu0 0
      %795 = vmatprep.subr.bf16.mxu0 0
      %796 = vmatpush2.bf16.msra.mxu0 0
      %797 = vmatprep.subr.bf16.mxu0 0
      %798 = vmatpush2.bf16.msra.mxu0 0
      %799 = vmatprep.mubr.bf16.mxu0 0
      %800 = vmatmul.mubr.bf16.gmra.mxu0 %v700
      %v801 = vpop.f32.mrf.mxu0
      %v802 = vadd.f32 0.0, %v801
      %v803 = vpop.f32.mrf.mxu0
      %v804 = vpop.f32.mrf.mxu0
      %v805 = vadd.f32 0.0, %v804
      %v806 = vpop.f32.mrf.mxu0
      %807 = vdwg.mxu0
      %v808 = vadd.f32 %v393, %v802
      %v809 = vadd.f32 %v394, %v805
      %s810 = scalar_lea.vmem %s3, 64
      %v811 = vld [vmem:[%s810] sm:$0xf]
      %v812 = vld [vmem:[%s810 + $0x4] sm:$0xf]
      %v813 = vld [vmem:[%s810 + $0x8] sm:$0xf]
      %v814 = vld [vmem:[%s810 + $0xc] sm:$0xf]
      %v815 = vld [vmem:[%s810 + $0x10] sm:$0xf]
      %v816 = vld [vmem:[%s810 + $0x14] sm:$0xf]
      %v817 = vld [vmem:[%s810 + $0x18] sm:$0xf]
      %v818 = vld [vmem:[%s810 + $0x1c] sm:$0xf]
      %v819 = vld [vmem:[%s810 + $0x20] sm:$0xf]
      %v820 = vld [vmem:[%s810 + $0x24] sm:$0xf]
      %v821 = vld [vmem:[%s810 + $0x28] sm:$0xf]
      %v822 = vld [vmem:[%s810 + $0x2c] sm:$0xf]
      %v823 = vld [vmem:[%s810 + $0x30] sm:$0xf]
      %v824 = vld [vmem:[%s810 + $0x34] sm:$0xf]
      %v825 = vld [vmem:[%s810 + $0x38] sm:$0xf]
      %v826 = vld [vmem:[%s810 + $0x3c] sm:$0xf]
      %v843 = vunpack.c.l.b16 %v811
      %v844 = vunpack.c.l.b16 %v812
      %v845 = vunpack.c.l.b16 %v813
      %v846 = vunpack.c.l.b16 %v814
      %v847 = vunpack.c.l.b16 %v815
      %v848 = vunpack.c.l.b16 %v816
      %v849 = vunpack.c.l.b16 %v817
      %v850 = vunpack.c.l.b16 %v818
      %v851 = vunpack.c.l.b16 %v819
      %v852 = vunpack.c.l.b16 %v820
      %v853 = vunpack.c.l.b16 %v821
      %v854 = vunpack.c.l.b16 %v822
      %v855 = vunpack.c.l.b16 %v823
      %v856 = vunpack.c.l.b16 %v824
      %v857 = vunpack.c.l.b16 %v825
      %v858 = vunpack.c.l.b16 %v826
      %v859 = vpack.c.b16 %v844, %v843
      %v860 = vpack.c.b16 %v846, %v845
      %v861 = vpack.c.b16 %v848, %v847
      %v862 = vpack.c.b16 %v850, %v849
      %v863 = vpack.c.b16 %v852, %v851
      %v864 = vpack.c.b16 %v854, %v853
      %v865 = vpack.c.b16 %v856, %v855
      %v866 = vpack.c.b16 %v858, %v857
      %875 = vmatprep.subr.bf16.mxu0 0
      %876 = vmatpush1.bf16.msra.mxu0 %v866
      %877 = vmatprep.subr.bf16.mxu0 0
      %878 = vmatpush1.bf16.msra.mxu0 %v865
      %879 = vmatprep.subr.bf16.mxu0 0
      %880 = vmatpush1.bf16.msra.mxu0 %v864
      %881 = vmatprep.subr.bf16.mxu0 0
      %882 = vmatpush1.bf16.msra.mxu0 %v863
      %883 = vmatprep.subr.bf16.mxu0 0
      %884 = vmatpush1.bf16.msra.mxu0 %v862
      %885 = vmatprep.subr.bf16.mxu0 0
      %886 = vmatpush1.bf16.msra.mxu0 %v861
      %887 = vmatprep.subr.bf16.mxu0 0
      %888 = vmatpush1.bf16.msra.mxu0 %v860
      %889 = vmatprep.subr.bf16.mxu0 0
      %890 = vmatpush1.bf16.msra.mxu0 %v859
      %891 = vmatprep.subr.bf16.mxu0 0
      %892 = vmatpush2.bf16.msra.mxu0 0
      %893 = vmatprep.subr.bf16.mxu0 0
      %894 = vmatpush2.bf16.msra.mxu0 0
      %895 = vmatprep.subr.bf16.mxu0 0
      %896 = vmatpush2.bf16.msra.mxu0 0
      %897 = vmatprep.subr.bf16.mxu0 0
      %898 = vmatpush2.bf16.msra.mxu0 0
      %899 = vmatprep.subr.bf16.mxu0 0
      %900 = vmatpush2.bf16.msra.mxu0 0
      %901 = vmatprep.subr.bf16.mxu0 0
      %902 = vmatpush2.bf16.msra.mxu0 0
      %903 = vmatprep.subr.bf16.mxu0 0
      %904 = vmatpush2.bf16.msra.mxu0 0
      %905 = vmatprep.subr.bf16.mxu0 0
      %906 = vmatpush2.bf16.msra.mxu0 0
      %907 = vmatprep.mubr.bf16.mxu0 0
      %908 = vmatmul.mubr.bf16.gmra.mxu0 %v701
      %v909 = vpop.f32.mrf.mxu0
      %v910 = vadd.f32 0.0, %v909
      %v911 = vpop.f32.mrf.mxu0
      %v912 = vpop.f32.mrf.mxu0
      %v913 = vadd.f32 0.0, %v912
      %v914 = vpop.f32.mrf.mxu0
      %915 = vdwg.mxu0
      %v916 = vadd.f32 %v808, %v910
      %v917 = vadd.f32 %v809, %v913
      %s918 = scalar_lea.vmem %s3, 128
      %v919 = vld [vmem:[%s918] sm:$0xf]
      %v920 = vld [vmem:[%s918 + $0x4] sm:$0xf]
      %v921 = vld [vmem:[%s918 + $0x8] sm:$0xf]
      %v922 = vld [vmem:[%s918 + $0xc] sm:$0xf]
      %v923 = vld [vmem:[%s918 + $0x10] sm:$0xf]
      %v924 = vld [vmem:[%s918 + $0x14] sm:$0xf]
      %v925 = vld [vmem:[%s918 + $0x18] sm:$0xf]
      %v926 = vld [vmem:[%s918 + $0x1c] sm:$0xf]
      %v927 = vld [vmem:[%s918 + $0x20] sm:$0xf]
      %v928 = vld [vmem:[%s918 + $0x24] sm:$0xf]
      %v929 = vld [vmem:[%s918 + $0x28] sm:$0xf]
      %v930 = vld [vmem:[%s918 + $0x2c] sm:$0xf]
      %v931 = vld [vmem:[%s918 + $0x30] sm:$0xf]
      %v932 = vld [vmem:[%s918 + $0x34] sm:$0xf]
      %v933 = vld [vmem:[%s918 + $0x38] sm:$0xf]
      %v934 = vld [vmem:[%s918 + $0x3c] sm:$0xf]
      %v951 = vunpack.c.l.b16 %v919
      %v952 = vunpack.c.l.b16 %v920
      %v953 = vunpack.c.l.b16 %v921
      %v954 = vunpack.c.l.b16 %v922
      %v955 = vunpack.c.l.b16 %v923
      %v956 = vunpack.c.l.b16 %v924
      %v957 = vunpack.c.l.b16 %v925
      %v958 = vunpack.c.l.b16 %v926
      %v959 = vunpack.c.l.b16 %v927
      %v960 = vunpack.c.l.b16 %v928
      %v961 = vunpack.c.l.b16 %v929
      %v962 = vunpack.c.l.b16 %v930
      %v963 = vunpack.c.l.b16 %v931
      %v964 = vunpack.c.l.b16 %v932
      %v965 = vunpack.c.l.b16 %v933
      %v966 = vunpack.c.l.b16 %v934
      %v967 = vpack.c.b16 %v952, %v951
      %v968 = vpack.c.b16 %v954, %v953
      %v969 = vpack.c.b16 %v956, %v955
      %v970 = vpack.c.b16 %v958, %v957
      %v971 = vpack.c.b16 %v960, %v959
      %v972 = vpack.c.b16 %v962, %v961
      %v973 = vpack.c.b16 %v964, %v963
      %v974 = vpack.c.b16 %v966, %v965
      %983 = vmatprep.subr.bf16.mxu0 0
      %984 = vmatpush1.bf16.msra.mxu0 %v974
      %985 = vmatprep.subr.bf16.mxu0 0
      %986 = vmatpush1.bf16.msra.mxu0 %v973
      %987 = vmatprep.subr.bf16.mxu0 0
      %988 = vmatpush1.bf16.msra.mxu0 %v972
      %989 = vmatprep.subr.bf16.mxu0 0
      %990 = vmatpush1.bf16.msra.mxu0 %v971
      %991 = vmatprep.subr.bf16.mxu0 0
      %992 = vmatpush1.bf16.msra.mxu0 %v970
      %993 = vmatprep.subr.bf16.mxu0 0
      %994 = vmatpush1.bf16.msra.mxu0 %v969
      %995 = vmatprep.subr.bf16.mxu0 0
      %996 = vmatpush1.bf16.msra.mxu0 %v968
      %997 = vmatprep.subr.bf16.mxu0 0
      %998 = vmatpush1.bf16.msra.mxu0 %v967
      %999 = vmatprep.subr.bf16.mxu0 0
      %1000 = vmatpush2.bf16.msra.mxu0 0
      %1001 = vmatprep.subr.bf16.mxu0 0
      %1002 = vmatpush2.bf16.msra.mxu0 0
      %1003 = vmatprep.subr.bf16.mxu0 0
      %1004 = vmatpush2.bf16.msra.mxu0 0
      %1005 = vmatprep.subr.bf16.mxu0 0
      %1006 = vmatpush2.bf16.msra.mxu0 0
      %1007 = vmatprep.subr.bf16.mxu0 0
      %1008 = vmatpush2.bf16.msra.mxu0 0
      %1009 = vmatprep.subr.bf16.mxu0 0
      %1010 = vmatpush2.bf16.msra.mxu0 0
      %1011 = vmatprep.subr.bf16.mxu0 0
      %1012 = vmatpush2.bf16.msra.mxu0 0
      %1013 = vmatprep.subr.bf16.mxu0 0
      %1014 = vmatpush2.bf16.msra.mxu0 0
      %1015 = vmatprep.mubr.bf16.mxu0 0
      %1016 = vmatmul.mubr.bf16.gmra.mxu0 %v702
      %v1017 = vpop.f32.mrf.mxu0
      %v1018 = vadd.f32 0.0, %v1017
      %v1019 = vpop.f32.mrf.mxu0
      %v1020 = vpop.f32.mrf.mxu0
      %v1021 = vadd.f32 0.0, %v1020
      %v1022 = vpop.f32.mrf.mxu0
      %1023 = vdwg.mxu0
      %v1024 = vadd.f32 %v916, %v1018
      %v1025 = vadd.f32 %v917, %v1021
      %v1026 = vmax.f32 %v1024, 0.0
      %v1027 = vmax.f32 %v1025, 0.0
      %1028 = vst [vmem:[%s253] sm:$0xff] %v1026
      %1029 = vst [vmem:[%s253 + $0x8] sm:$0xff] %v1027
      %s1030 = smul.u32 2, %s17
      %p1031 = scmp.lt.s32.totalorder %s1030, 3
      %s1032 = scalar_select %p1031, %s1030, 3
      %s1033 = smul.addr %s1032, 8
      %s1034 = scalar_lea.vmem %s6, %s1033
      // Predicated region
      $region45: #{resblock_forward.1} parent=43 // pred_check
        %p1035 = pneg %p166
      $region46: #{resblock_forward.1} parent=43 // pred_check_branch
        %1037 = sbr.rel (%p1035) target = $region48
      $region47: #{resblock_forward.1} parent=43 // pred_region
        %s1038 = smul.u32 2, %s17
      $region48: #{resblock_forward.1} parent=43 // pred_fallthru
        _
    $region44: #{resblock_forward.1} parent=5 // pred_fallthru
      _
    %p1039 = scmp.le.s32.totalorder 2, %s12
    // Predicated region
    $region49: #{resblock_forward.1} parent=5 // pred_check
      %p1040 = pneg %p1039
    $region50: #{resblock_forward.1} parent=5 // pred_check_branch
      %1042 = sbr.rel (%p1040) target = $region52
    $region51: #{resblock_forward.1} parent=5 // pred_region
      %s1043 = ssub.s32 %s12, 2
      // Predicated region
      $region53: #{resblock_forward.1} parent=51 // pred_check
        %p1044 = pneg %p172
      $region54: #{resblock_forward.1} parent=51 // pred_check_branch
        %1046 = sbr.rel (%p1044) target = $region56
      $region55: #{resblock_forward.1} parent=51 // pred_region
        %s1047 = smul.u32 2, %s18
        %p1048 = scmp.lt.s32.totalorder %s1047, 3
        %s1049 = scalar_select %p1048, %s1047, 3
        %s1050 = smul.addr %s1049, 8
        %s1051 = scalar_lea.vmem %s6, %s1050
      $region56: #{resblock_forward.1} parent=51 // pred_fallthru
        _
    $region52: #{resblock_forward.1} parent=5 // pred_fallthru
      _
  $region6: #{resblock_forward.1} parent=0 // loop_footer
    %s16 = sadd.s32 1, %s12
  $region7: #{resblock_forward.1} parent=0 // loop_footer_branch
    %11 = sbr.rel target = $region3
  $region8: #{resblock_forward.1} parent=0 // loop_exit
    _

</llo_original>
